<compile_context>
chip_gen: v5e
topology: v5e:2x2
jax: 0.10.0
libtpu: 0.0.40
codegen_flags: <defaults>
</compile_context>

<pallas_src>
import numpy as np
import jax
import jax.numpy as jnp
from jax import lax
from jax.experimental import pallas as pl
from jax.experimental.pallas import tpu as pltpu


def _round_up(x: int, m: int) -> int:
    return ((x + m - 1) // m) * m


# ---------------------------------------------------------------------------
# Pallas kernel: gather `tb` embedding rows per grid step.
# ---------------------------------------------------------------------------
def _embed_gather_kernel(ids_smem, table_hbm, out_ref, stage, copy_sem):
    # ids_smem  : int32 [n_pad]     scalar-prefetched flat token ids (SMEM)
    # table_hbm : [V, D_pad]        embedding table, left in HBM (pl.ANY)
    # out_ref   : [tb, D_pad]       output tile (VMEM, auto-pipelined/double-buffered)
    # stage     : [tb, D_pad]       VMEM staging buffer (scratch)
    # copy_sem  : DMA semaphore array, shape (1,)
    tb = stage.shape[0]
    base = pl.program_id(0) * tb

    # Issue all `tb` row-gather DMAs back-to-back so many fetches are in
    # flight at once (descriptor issue overlaps DMA completion).
    def _issue(r, carry):
        row = ids_smem[base + r]
        pltpu.make_async_copy(table_hbm.at[row], stage.at[r], copy_sem.at[0]).start()
        return carry

    lax.fori_loop(0, tb, _issue, 0)

    # Drain: every copy has identical size, so `tb` waits on the shared
    # semaphore block until all rows have landed.
    def _drain(r, carry):
        pltpu.make_async_copy(table_hbm.at[0], stage.at[r], copy_sem.at[0]).wait()
        return carry

    lax.fori_loop(0, tb, _drain, 0)

    # Dense (tb, D_pad) store -> unmasked full-vreg stores; the output block's
    # HBM writeback is overlapped with the next step's gathers by the pipeline.
    out_ref[...] = stage[...]


# ---------------------------------------------------------------------------
# Wrapper: pad shapes for lane/sublane density and launch the kernel.
# ---------------------------------------------------------------------------
def glove_embedding_lookup(ids_flat: jax.Array, table: jax.Array,
                           *, block_tokens: int = 256) -> jax.Array:
    """ids_flat: int [N]; table: [V, D] -> [N, D] in the table's dtype."""
    n = int(ids_flat.shape[0])
    v, d = int(table.shape[0]), int(table.shape[1])

    # Keep every row DMA and output store lane-dense: pad D up to a multiple of
    # 128 (real GloVe dims 100/200/300 need this).  Production code would store
    # the table pre-padded once; the per-call pad here is for demo generality.
    d_pad = _round_up(d, 128)
    if d_pad != d:
        table = jnp.pad(table, ((0, 0), (0, d_pad - d)))

    # Tokens per grid step: multiple of 8 so the output block is sublane-dense.
    tb = _round_up(min(block_tokens, n), 8)
    n_pad = _round_up(n, tb)
    if n_pad != n:
        # Pad with the module's padding row id (vocab_size - 1); sliced off below.
        ids_flat = jnp.pad(ids_flat, (0, n_pad - n), constant_values=v - 1)
    n_blocks = n_pad // tb

    grid_spec = pltpu.PrefetchScalarGridSpec(
        num_scalar_prefetch=1,                           # ids land in SMEM
        grid=(n_blocks,),
        in_specs=[pl.BlockSpec(memory_space=pl.ANY)],    # table stays in HBM
        out_specs=pl.BlockSpec((tb, d_pad), lambda i, ids: (i, 0)),
        scratch_shapes=[
            pltpu.VMEM((tb, d_pad), table.dtype),        # row staging buffer
            pltpu.SemaphoreType.DMA((1,)),
        ],
    )

    out = pl.pallas_call(
        _embed_gather_kernel,
        grid_spec=grid_spec,
        out_shape=jax.ShapeDtypeStruct((n_pad, d_pad), table.dtype),
        compiler_params=pltpu.CompilerParams(
            # No cross-step state -> safe to shard across v7x's two TensorCores.
            dimension_semantics=("parallel",),
        ),
    )(ids_flat.astype(jnp.int32), table)

    out = out[:n]
    if d_pad != d:
        out = out[:, :d]
    return out


# ---------------------------------------------------------------------------
# Module-equivalent wrapper (Python glue mirrors get_glove()).
# ---------------------------------------------------------------------------
class GetEmbedding:
    def __init__(self, vocab_size: int, glove_dim: int, seed: int = 0,
                 block_tokens: int = 256):
        self.vocab_size = vocab_size
        self.glove_dim = glove_dim
        self.block_tokens = block_tokens
        # Deterministic synthetic GloVe table (stand-in for np.load(glove_file)).
        # A bf16 table also works unchanged (the kernel is a pure copy) and
        # halves HBM traffic; f32 is kept to match nn.Embedding exactly.
        key = jax.random.PRNGKey(seed)
        self.glove = jax.random.normal(
            key, (vocab_size, glove_dim), dtype=jnp.float32)
        # Deterministic synthetic word2id dict (stand-in for word2id_file);
        # unknown words map to id 0, as in the reference (`word2id.get(w, 0)`).
        self.word2id = {f"word{i}": i for i in range(vocab_size)}

    def __call__(self, sentence_lists):
        # ---- Python glue, identical semantics to get_glove() --------------
        # TODO(synk): the string->id dict lookup / .npy file loading has no
        # Pallas equivalent; it stays host-side.
        max_len = max(len(s) for s in sentence_lists)
        ids = [[self.word2id.get(w, 0) for w in s] for s in sentence_lists]
        ids = [row + [self.vocab_size - 1] * (max_len - len(row)) for row in ids]
        ids = jnp.asarray(np.asarray(ids, dtype=np.int32))           # [B, L]
        b, l = ids.shape

        # ---- hot path: batched embedding gather in Pallas ------------------
        out_flat = glove_embedding_lookup(
            ids.reshape(-1), self.glove, block_tokens=self.block_tokens)
        return out_flat.reshape(b, l, self.glove_dim)                # [B, L, D]


if __name__ == "__main__":
    VOCAB_SIZE = 64
    GLOVE_DIM = 128

    # Primary config: 4 sentences, max_len 64 -> 256 flat tokens, 64 per grid
    # step -> 4 grid steps (exercises the multi-block gather path).
    model = GetEmbedding(VOCAB_SIZE, GLOVE_DIM, seed=0, block_tokens=64)
    lengths = [64, 37, 50, 12]
    sentences = []
    for si, L in enumerate(lengths):
        sentences.append([f"word{(si * 131 + 7 * j) % VOCAB_SIZE}" for j in range(L)])
    sentences[1][3] = "totally_unknown_token"       # OOV -> id 0

    out = jax.block_until_ready(model(sentences))

    max_len = max(len(s) for s in sentences)
    ids_ref = np.asarray(
        [[model.word2id.get(w, 0) for w in s]
         + [VOCAB_SIZE - 1] * (max_len - len(s)) for s in sentences],
        dtype=np.int32)
    ref = jnp.take(model.glove, jnp.asarray(ids_ref), axis=0)

    assert out.shape == (len(sentences), max_len, GLOVE_DIM), out.shape
    assert out.dtype == jnp.float32
    assert bool(jnp.allclose(out, ref)), "Pallas embedding lookup mismatch (aligned D)"

    # Second config: non-128-multiple glove_dim (like real GloVe 100/300) and a
    # token count that is not a multiple of 8 -> exercises D padding / slicing
    # and token padding paths.
    model2 = GetEmbedding(VOCAB_SIZE, 100, seed=1)
    sents2 = [["word1", "word5", "word9", "unknown", "word63"],
              ["word2", "word4", "word6"]]
    out2 = jax.block_until_ready(model2(sents2))

    max_len2 = max(len(s) for s in sents2)
    ids2 = np.asarray(
        [[model2.word2id.get(w, 0) for w in s]
         + [VOCAB_SIZE - 1] * (max_len2 - len(s)) for s in sents2],
        dtype=np.int32)
    ref2 = jnp.take(model2.glove, jnp.asarray(ids2), axis=0)

    assert out2.shape == (2, max_len2, 100), out2.shape
    assert bool(jnp.allclose(out2, ref2)), "Pallas embedding lookup mismatch (padded D)"

    print("KERNEL_OK")
</pallas_src>

<mosaic_0001>
module attributes {stable_mosaic.version = 11 : i64} {
  func.func @_embed_gather_kernel(%arg0: i32, %arg1: memref<256xi32, #tpu.memory_space<smem>>, %arg2: memref<64x128xf32, #tpu.memory_space<any>>, %arg3: memref<64x128xf32, #tpu.memory_space<vmem>>, %arg4: memref<64x128xf32, #tpu.memory_space<vmem>>, %arg5: memref<1x!tpu.dma_semaphore, #tpu.memory_space<semaphore_mem>>) attributes {dimension_semantics = [#tpu.dimension_semantics<parallel>], iteration_bounds = array<i64: 4>, scalar_prefetch = 1 : i64, scratch_operands = 2 : i64, tpu.core_type = #tpu.core_type<tc>, window_params = [{}, {transform_indices = @transform_1, window_bounds = array<i64: 64, 128>}]} {
    %c64_i32 = arith.constant 64 : i32
    %0 = arith.muli %arg0, %c64_i32 : i32
    %c0_i32 = arith.constant 0 : i32
    %c64_i32_0 = arith.constant 64 : i32
    %1 = arith.addi %c0_i32, %c64_i32_0 : i32
    %c1_i32 = arith.constant 1 : i32
    scf.for %arg6 = %c0_i32 to %1 step %c1_i32  : i32 {
      %5 = arith.addi %0, %arg6 : i32
      %6 = arith.index_cast %5 : i32 to index
      %7 = memref.load %arg1[%6] : memref<256xi32, #tpu.memory_space<smem>>
      %c0_i32_9 = arith.constant 0 : i32
      %c0_i32_10 = arith.constant 0 : i32
      %8 = tpu.memref_slice %arg2[%7, %c0_i32_10] : memref<64x128xf32, #tpu.memory_space<any>> -> memref<1x128xf32, #tpu.memory_space<any>>
      %9 = tpu.memref_squeeze %8 : memref<1x128xf32, #tpu.memory_space<any>> -> memref<128xf32, #tpu.memory_space<any>>
      %c0_i32_11 = arith.constant 0 : i32
      %10 = tpu.memref_slice %arg4[%arg6, %c0_i32_11] : memref<64x128xf32, #tpu.memory_space<vmem>> -> memref<1x128xf32, #tpu.memory_space<vmem>>
      %11 = tpu.memref_squeeze %10 : memref<1x128xf32, #tpu.memory_space<vmem>> -> memref<128xf32, #tpu.memory_space<vmem>>
      %12 = tpu.memref_slice %arg5[%c0_i32_9] : memref<1x!tpu.dma_semaphore, #tpu.memory_space<semaphore_mem>> -> memref<1x!tpu.dma_semaphore, #tpu.memory_space<semaphore_mem>>
      %13 = tpu.memref_squeeze %12 : memref<1x!tpu.dma_semaphore, #tpu.memory_space<semaphore_mem>> -> memref<!tpu.dma_semaphore, #tpu.memory_space<semaphore_mem>>
      tpu.enqueue_dma source(%9 : memref<128xf32, #tpu.memory_space<any>>) target(%11 : memref<128xf32, #tpu.memory_space<vmem>>) target_semaphore(%13 : memref<!tpu.dma_semaphore, #tpu.memory_space<semaphore_mem>>)
    }
    %c64_i32_1 = arith.constant 64 : i32
    %c0_i32_2 = arith.constant 0 : i32
    %c64_i32_3 = arith.constant 64 : i32
    %2 = arith.addi %c0_i32_2, %c64_i32_3 : i32
    %c1_i32_4 = arith.constant 1 : i32
    scf.for %arg6 = %c0_i32_2 to %2 step %c1_i32_4  : i32 {
      %c0_i32_9 = arith.constant 0 : i32
      %c0_i32_10 = arith.constant 0 : i32
      %c0_i32_11 = arith.constant 0 : i32
      %5 = tpu.memref_slice %arg2[%c0_i32_9, %c0_i32_11] : memref<64x128xf32, #tpu.memory_space<any>> -> memref<1x128xf32, #tpu.memory_space<any>>
      %6 = tpu.memref_squeeze %5 : memref<1x128xf32, #tpu.memory_space<any>> -> memref<128xf32, #tpu.memory_space<any>>
      %c0_i32_12 = arith.constant 0 : i32
      %7 = tpu.memref_slice %arg4[%arg6, %c0_i32_12] : memref<64x128xf32, #tpu.memory_space<vmem>> -> memref<1x128xf32, #tpu.memory_space<vmem>>
      %8 = tpu.memref_squeeze %7 : memref<1x128xf32, #tpu.memory_space<vmem>> -> memref<128xf32, #tpu.memory_space<vmem>>
      %9 = tpu.memref_slice %arg5[%c0_i32_10] : memref<1x!tpu.dma_semaphore, #tpu.memory_space<semaphore_mem>> -> memref<1x!tpu.dma_semaphore, #tpu.memory_space<semaphore_mem>>
      %10 = tpu.memref_squeeze %9 : memref<1x!tpu.dma_semaphore, #tpu.memory_space<semaphore_mem>> -> memref<!tpu.dma_semaphore, #tpu.memory_space<semaphore_mem>>
      tpu.wait_dma2 semaphore(%10 : memref<!tpu.dma_semaphore, #tpu.memory_space<semaphore_mem>>) src(%6 : memref<128xf32, #tpu.memory_space<any>>) dst(%8 : memref<128xf32, #tpu.memory_space<vmem>>)
    }
    %c64_i32_5 = arith.constant 64 : i32
    %c0 = arith.constant 0 : index
    %c0_6 = arith.constant 0 : index
    %3 = vector.load %arg4[%c0, %c0_6] : memref<64x128xf32, #tpu.memory_space<vmem>>, vector<64x128xf32>
    %c0_7 = arith.constant 0 : index
    %c0_8 = arith.constant 0 : index
    %4 = vector.load %arg3[%c0_7, %c0_8] : memref<64x128xf32, #tpu.memory_space<vmem>>, vector<64x128xf32>
    tpu.vector_store %arg3[%c0_7, %c0_8], %3 {strides = array<i32>} : memref<64x128xf32, #tpu.memory_space<vmem>>, vector<64x128xf32>,
    return
  }
  func.func @transform_1(%arg0: i32, %arg1: memref<256xi32, #tpu.memory_space<smem>>) -> (i32, i32) {
    %c0_i32 = arith.constant 0 : i32
    %c0_i32_0 = arith.constant 0 : i32
    return %arg0, %c0_i32 : i32, i32
  }
}

</mosaic_0001>

<llo_original>
// kernel: tpu_custom_call.1
$region0: #{tpu_custom_call.1}
  #allocation0 [shape = 'u32[]', space=smem, size = 0x4, offset = 0x4, fixed_abs, tag = 'smem constant byte address 0x4 - core index']
  #allocation1 [shape = 'u32[72,128]{1,0:T(1,128)}', space=vmem, size = 0x9000, scoped, tag = 'internal scratch']
  #allocation2 [shape = 'f32[64,128]{1,0:T(8,128)}', space=vmem, size = 0x8000, scoped, tag = 'scratch operand']
  #allocation3 [shape = 's32[1]{0}', space=sflag, size = 0x4, scoped, tag = 'scratch operand']
  #allocation4 [shape = 's32[1]{0}', space=sflag, size = 0x4, scoped, tag = 'scoped memory for tpu_custom_call.1']
  #allocation5 [shape = 'u8[1024]{0}', space=smem, size = 0x400, scoped, tag = 'prefetched SMEM operand 0']
  #allocation8 [shape = 's32[]', space=sflag, size = 0x4, offset = 0, fixed_abs, tag = 'sflag constant byte address 0x0 - dummy sync flag']
  #allocation9 [shape = 's32[]', space=sflag, size = 0x4, offset = 0, fixed_abs, tag = 'sflag constant byte address 0x0 - dummy sync flag']
  #allocation10 [shape = 'u32[]', space=smem, size = 0x4, offset = 0x44, fixed_abs, tag = 'smem constant byte address 0x44 - assertion arg 0']
  #allocation11 [shape = 'u32[]', space=smem, size = 0x4, offset = 0x48, fixed_abs, tag = 'smem constant byte address 0x48 - assertion arg 1']
  %s0 = inlined_call_operand.hbm [shape: s32[256], index: 0, kind: input, shape index: {}]
  %s1 = inlined_call_operand.hbm [shape: f32[64,128], index: 1, kind: input, shape index: {}]
  %s2 = inlined_call_operand.hbm [shape: f32[256,128], index: 2, kind: output, shape index: {}]
  %s3 = sld [smem:[#allocation0]]
  $region43: #{tpu_custom_call.1} parent=0
    _
  %s5 = ssub.s32 1, %s3
  %s6 = scalar_select 0, %s5, %s3
  %s8 = sshll.u32 %s0, 4
  %s9 = int_to_ptr.hbm [resolvable:$true] %s8
  %11 = dma.hbm_to_smem %s9, 32, [#allocation5], [#allocation4]
  %13 = dma.done [#allocation4], 32
  %14 = sfence
  $region1: #{tpu_custom_call.1} parent=0
    #allocation6 [shape = 'u8[65536]{0}', space=vmem, size = 0x10000, scoped, tag = 'output window, operand 0']
    #allocation7 [shape = 's32[2]{0}', space=sflag, size = 0x8, scoped, tag = 'scoped memory for tpu_custom_call.1']
    %15 = vsyncpa [#allocation7], 0
    %s16 = scalar_lea.sflag [#allocation7], 1
    %17 = vsyncpa %s16, 0
    loop: start=0, step=1, limit=5
    $region2: #{tpu_custom_call.1} parent=1 // loop_pre_header
      _
    $region3: #{tpu_custom_call.1} parent=1 // loop_header
      %s19 = sphi 0, %s23
      %p20 = scmp.ge.s32.totalorder %s19, 5
      %s28 = sphi 0, %s30
      %s31 = sphi 0, %s28
      %s41 = sphi 0, %s31
    $region4: #{tpu_custom_call.1} parent=1 // loop_header_branch
      %22 = sbr.rel (%p20) target = $region8
    $region5: #{tpu_custom_call.1} parent=1 // loop_body
      %s24 = ssub.s32 %s19, 1
      %s25 = sadd.s32 %s19, 1
      %s26 = ssub.s32 %s19, %s25
      %p27 = scmp.eq.s32.totalorder %s26, 0
      %s29 = sadd.s32 %s28, 1
      %s30 = scalar_select %p27, %s28, %s29
      %p32 = pneg %p27
      %p33 = scmp.eq.s32.totalorder %s19, 3
      %p34 = por %p32, %p33
      %p35 = scmp.ne.s32.totalorder %s28, %s31
      %p36 = scmp.eq.s32.totalorder %s19, 0
      %p37 = por %p35, %p36
      %p38 = scmp.ne.s32.totalorder %s28, %s31
      %p39 = scmp.eq.s32.totalorder %s24, 3
      %p40 = por %p38, %p39
      %p42 = scmp.ne.s32.totalorder %s31, %s41
      %p43 = scmp.eq.s32.totalorder %s24, 0
      %p44 = por %p42, %p43
      %p45 = scmp.lt.s32.totalorder %s19, 4
      // Predicated region
      $region9: #{tpu_custom_call.1} parent=5 // pred_check
        %p46 = pneg %p45
      $region10: #{tpu_custom_call.1} parent=5 // pred_check_branch
        %48 = sbr.rel (%p46) target = $region12
      $region11: #{tpu_custom_call.1} parent=5 // pred_region
        %p49 = pneg %p37
        %p50 = pneg %p34
        %s51 = sand.u32 %s28, 1
        %s52 = scalar_lea.sflag [#allocation7], %s51
        %s53 = sand.u32 %s28, 1
        %s54 = smul.addr %s53, 64
        %s55 = scalar_lea.vmem [#allocation6], %s54
        %s56 = smul.u32 8, %s19
        %s57 = smul.u32 %s19, 64
        loop: start=0, step=1, limit=64
        $region13: #{tpu_custom_call.1} parent=11 // loop_pre_header
          _
        $region14: #{tpu_custom_call.1} parent=11 // loop_header
          %s59 = sphi 0, %s63
          %p60 = scmp.ge.s32.totalorder %s59, 64
        $region15: #{tpu_custom_call.1} parent=11 // loop_header_branch
          %62 = sbr.rel (%p60) target = $region19
        $region16: #{tpu_custom_call.1} parent=11 // loop_body
          %s64 = sadd.s32 %s57, %s59
          %s65 = sld [smem:[#allocation5 + %s64]]
          %s66 = scalar_lea.hbm %s1, %s65
          %s67 = scalar_lea.vmem [#allocation2], %s59
          // Predicated region
          $region20: #{tpu_custom_call.1} parent=16 // pred_check
            _
          $region21: #{tpu_custom_call.1} parent=16 // pred_check_branch
            %69 = sbr.rel target = $region23
          $region22: #{tpu_custom_call.1} parent=16 // pred_region
            %70 = sst [smem:[#allocation10]] [#allocation9]
            %71 = sst [smem:[#allocation11]] [#allocation8]
          $region23: #{tpu_custom_call.1} parent=16 // pred_fallthru
            _
          %73 = shalt.err (0)
          %s75 = sshll.u32 %s66, 4
          %s76 = int_to_ptr.hbm [resolvable:$true] %s75
          %s77 = sshll.u32 %s67, 4
          %s78 = int_to_ptr.vmem [resolvable:$true] %s77
          %80 = dma.hbm_to_vmem [thread:$0]  %s76, 16, %s78, [#allocation3]
        $region17: #{tpu_custom_call.1} parent=11 // loop_footer
          %s63 = sadd.s32 1, %s59
        $region18: #{tpu_custom_call.1} parent=11 // loop_footer_branch
          %58 = sbr.rel target = $region14
        $region19: #{tpu_custom_call.1} parent=11 // loop_exit
          _
        loop: start=0, step=1, limit=64
        $region24: #{tpu_custom_call.1} parent=11 // loop_pre_header
          _
        $region25: #{tpu_custom_call.1} parent=11 // loop_header
          %s82 = sphi 0, %s86
          %p83 = scmp.ge.s32.totalorder %s82, 64
        $region26: #{tpu_custom_call.1} parent=11 // loop_header_branch
          %85 = sbr.rel (%p83) target = $region30
        $region27: #{tpu_custom_call.1} parent=11 // loop_body
          %88 = dma.done [#allocation3], 16
        $region28: #{tpu_custom_call.1} parent=11 // loop_footer
          %s86 = sadd.s32 1, %s82
        $region29: #{tpu_custom_call.1} parent=11 // loop_footer_branch
          %81 = sbr.rel target = $region25
        $region30: #{tpu_custom_call.1} parent=11 // loop_exit
          _
        %v89 = vld [vmem:[#allocation2] sm:$0xff]
        %v90 = vld [vmem:[#allocation2 + $0x8] sm:$0xff]
        %v91 = vld [vmem:[#allocation2 + $0x10] sm:$0xff]
        %v92 = vld [vmem:[#allocation2 + $0x18] sm:$0xff]
        %v93 = vld [vmem:[#allocation2 + $0x20] sm:$0xff]
        %v94 = vld [vmem:[#allocation2 + $0x28] sm:$0xff]
        %v95 = vld [vmem:[#allocation2 + $0x30] sm:$0xff]
        %v96 = vld [vmem:[#allocation2 + $0x38] sm:$0xff]
        %97 = vst [vmem:[%s55] sm:$0xff] %v89
        %98 = vst [vmem:[%s55 + $0x8] sm:$0xff] %v90
        %99 = vst [vmem:[%s55 + $0x10] sm:$0xff] %v91
        %100 = vst [vmem:[%s55 + $0x18] sm:$0xff] %v92
        %101 = vst [vmem:[%s55 + $0x20] sm:$0xff] %v93
        %102 = vst [vmem:[%s55 + $0x28] sm:$0xff] %v94
        %103 = vst [vmem:[%s55 + $0x30] sm:$0xff] %v95
        %104 = vst [vmem:[%s55 + $0x38] sm:$0xff] %v96
        %s105 = sand.u32 %s28, 1
        %s106 = scalar_lea.sflag [#allocation7], %s105
        %s107 = sand.u32 %s28, 1
        %s108 = smul.addr %s107, 64
        %s109 = scalar_lea.vmem [#allocation6], %s108
        // Predicated region
        $region31: #{tpu_custom_call.1} parent=11 // pred_check
          %p110 = pneg %p34
        $region32: #{tpu_custom_call.1} parent=11 // pred_check_branch
          %112 = sbr.rel (%p110) target = $region34
        $region33: #{tpu_custom_call.1} parent=11 // pred_region
          %s113 = smul.u32 8, %s19
          %115 = vsyncadd %s106, 0
          %s116 = smul.addr %s113, 8
          %s117 = scalar_lea.hbm %s2, %s116
          %s118 = sshll.u32 %s109, 4
          %s119 = int_to_ptr.vmem [resolvable:$true] %s118
          %s120 = sshll.u32 %s117, 4
          %s121 = int_to_ptr.hbm [resolvable:$true] %s120
          %126 = dma.vmem_to_hbm [thread:$0]  %s119, 1024, %s121, %s106, 128, 128, 8
        $region34: #{tpu_custom_call.1} parent=11 // pred_fallthru
          _
      $region12: #{tpu_custom_call.1} parent=5 // pred_fallthru
        _
      %p127 = scmp.le.s32.totalorder 1, %s19
      // Predicated region
      $region35: #{tpu_custom_call.1} parent=5 // pred_check
        %p128 = pneg %p127
      $region36: #{tpu_custom_call.1} parent=5 // pred_check_branch
        %130 = sbr.rel (%p128) target = $region38
      $region37: #{tpu_custom_call.1} parent=5 // pred_region
        %s131 = ssub.s32 %s19, 1
        // Predicated region
        $region39: #{tpu_custom_call.1} parent=37 // pred_check
          %p132 = pneg %p40
        $region40: #{tpu_custom_call.1} parent=37 // pred_check_branch
          %134 = sbr.rel (%p132) target = $region42
        $region41: #{tpu_custom_call.1} parent=37 // pred_region
          %s135 = sand.u32 %s31, 1
          %s136 = scalar_lea.sflag [#allocation7], %s135
          %s137 = sand.u32 %s31, 1
          %s138 = smul.addr %s137, 64
          %s139 = scalar_lea.vmem [#allocation6], %s138
          %141 = dma.done %s136, 1024
        $region42: #{tpu_custom_call.1} parent=37 // pred_fallthru
          _
      $region38: #{tpu_custom_call.1} parent=5 // pred_fallthru
        _
    $region6: #{tpu_custom_call.1} parent=1 // loop_footer
      %s23 = sadd.s32 1, %s19
    $region7: #{tpu_custom_call.1} parent=1 // loop_footer_branch
      %18 = sbr.rel target = $region3
    $region8: #{tpu_custom_call.1} parent=1 // loop_exit
      _
    %142 = vsyncpa [#allocation7], 1
    %s143 = scalar_lea.sflag [#allocation7], 1
    %144 = vsyncpa %s143, 1
  %145 = vsyncmov [#allocation3]
  %s146 = vpop.sfrf %145
  %p147 = scmp.eq.s32.totalorder %s146, 0
  %p148 = pneg %p147
  %150 = shalt.err (%p148)

</llo_original>
